<compile_context>
chip_gen: v7x
topology: tpu7x:2x2x1
jax: 0.10.0
libtpu: 0.0.40
codegen_flags: <defaults>
</compile_context>

<pallas_src>
import jax
import jax.numpy as jnp
from jax.experimental import pallas as pl
from jax.experimental.pallas import tpu as pltpu


def _anfis_kernel(xm_ref, abc_ref, w1t_ref, bw2_ref, b2_ref, o_ref):
    # xm_ref : (FM, Bblk)  input, feature f repeated M times (row f*M+m = x[:, f])
    # abc_ref: (FM, 3)     columns = [1/a, b, c]   (f-major, m-minor -- torch order)
    # w1t_ref: (H, FM)     first Linear, transposed
    # bw2_ref: (H, 2)      columns = [b1, w2]
    # b2_ref : (1, 1)      scalar bias in SMEM
    # o_ref  : (1, Bblk)   lane-dense output block
    xm = xm_ref[...]                                           # (FM, Bblk)

    inv_a = abc_ref[:, 0:1]                                    # (FM, 1)
    b = abc_ref[:, 1:2]
    c = abc_ref[:, 2:3]

    # Bell MF: 1 / (1 + |(x - c)/a|^(2b)) == 1 / (1 + exp(b * log(d^2)))
    # Single epsilon add replaces the where/maximum guard pair: for b > 0 the
    # value at d == 0 is still ~0 (exp(b*log(1e-30)) ~= 0), matching torch.
    d = (xm - c) * inv_a
    z2 = d * d + 1e-30
    pow_term = jnp.exp(b * jnp.log(z2))
    mf = pl.reciprocal(1.0 + pow_term, approx=True)            # (FM, Bblk)

    # rules: Linear -> ReLU -> Linear, all in the transposed (batch-on-lanes) frame.
    h = jnp.dot(w1t_ref[...], mf, preferred_element_type=jnp.float32) + bw2_ref[:, 0:1]
    h = jnp.maximum(h, 0.0)                                    # (H, Bblk)
    # Final layer has a single output unit: VPU multiply + sublane reduce
    # (avoids a degenerate N=1 MXU matmul).
    y = jnp.sum(h * bw2_ref[:, 1:2], axis=0, keepdims=True) + b2_ref[0, 0]
    o_ref[...] = y                                             # (1, Bblk)


def _choose_block_b(batch, block_b, max_block_b):
    """Pick a lane-aligned batch tile: big (amortize per-step overhead), but
    keeping >= 2 grid steps when possible so v7x's two TCs both run."""
    lanes = ((batch + 127) // 128) * 128
    if block_b is None:
        if lanes <= 128:
            block_b = 128
        else:
            block_b = min(max_block_b, ((lanes // 2 + 127) // 128) * 128)
    else:
        block_b = max(128, ((block_b + 127) // 128) * 128)
    num_blocks = pl.cdiv(lanes, block_b)
    return block_b, num_blocks


def simple_anfis_forward(x, params, *, block_b=None, max_block_b=4096):
    """x: (B, F) float32. params: dict with natural (PyTorch-shaped) parameters."""
    B, F = x.shape
    a, b, c = params["a"], params["b"], params["c"]            # each (F, M)
    M = a.shape[1]
    H = params["b1"].shape[0]
    FM = F * M

    block_b, num_blocks = _choose_block_b(B, block_b, max_block_b)
    Bp = num_blocks * block_b

    # ---- layout glue (exact, cheap, done once per call) --------------------
    # Pre-repeat x feature-major (row f*M+m = x[:, f]) and put batch on lanes.
    x_rep = jnp.repeat(x.astype(jnp.float32), M, axis=1).T     # (FM, B)
    x_rep = jnp.pad(x_rep, ((0, 0), (0, Bp - B)))              # (FM, Bp)

    abc = jnp.stack(
        [(1.0 / a).reshape(FM), b.reshape(FM), c.reshape(FM)], axis=1
    ).astype(jnp.float32)                                      # (FM, 3)
    w1t = params["w1"].T.astype(jnp.float32)                   # (H, FM)
    bw2 = jnp.concatenate(
        [params["b1"].reshape(H, 1), params["w2"].reshape(H, 1)], axis=1
    ).astype(jnp.float32)                                      # (H, 2)
    b2 = params["b2"].reshape(1, 1).astype(jnp.float32)        # (1, 1) -> SMEM

    # transcendentals (exp + log + rcp per element) dominate; FLOPs are tiny.
    cost = pl.CostEstimate(
        flops=int(2 * Bp * FM * H + 4 * Bp * H + 8 * Bp * FM),
        transcendentals=int(3 * Bp * FM),
        bytes_accessed=int(4 * (FM * Bp + Bp + FM * 3 + H * FM + H * 2 + 1)),
    )

    out_t = pl.pallas_call(
        _anfis_kernel,
        out_shape=jax.ShapeDtypeStruct((1, Bp), jnp.float32),
        grid_spec=pltpu.PrefetchScalarGridSpec(
            num_scalar_prefetch=0,
            grid=(num_blocks,),
            in_specs=[
                pl.BlockSpec((FM, block_b), lambda i: (0, i)),       # x (batch on lanes)
                pl.BlockSpec((FM, 3), lambda i: (0, 0)),             # [1/a, b, c]
                pl.BlockSpec((H, FM), lambda i: (0, 0)),             # w1^T
                pl.BlockSpec((H, 2), lambda i: (0, 0)),              # [b1, w2]
                pl.BlockSpec((1, 1), lambda i: (0, 0),
                             memory_space=pltpu.MemorySpace.SMEM),   # b2 scalar
            ],
            out_specs=pl.BlockSpec((1, block_b), lambda i: (0, i)),  # lane-dense output
        ),
        compiler_params=pltpu.CompilerParams(
            dimension_semantics=("parallel",),
            # Headroom for very large tiles even on v5e's 16 MiB scoped default;
            # comfortably under every generation's physical VMEM.
            vmem_limit_bytes=48 * 1024 * 1024,
        ),
        cost_estimate=cost,
    )(x_rep, abc, w1t, bw2, b2)

    return out_t[0, :B].reshape(B, 1)


def init_params(key, in_features, mf_per_input, hidden_dim):
    F, M, H = in_features, mf_per_input, hidden_dim
    # BellMF params, torch init: a = ones, b = ones, c = linspace(0, 1, M) per feature
    a = jnp.ones((F, M), jnp.float32)
    b = jnp.ones((F, M), jnp.float32)
    c = jnp.tile(jnp.linspace(0.0, 1.0, M, dtype=jnp.float32), (F, 1))

    # Linear layers (uniform +-1/sqrt(fan_in), like torch default)
    k1, k2, k3, k4 = jax.random.split(key, 4)
    lim1 = float((F * M) ** -0.5)
    lim2 = float(H ** -0.5)
    w1 = jax.random.uniform(k1, (F * M, H), jnp.float32, -lim1, lim1)
    b1 = jax.random.uniform(k2, (H,), jnp.float32, -lim1, lim1)
    w2 = jax.random.uniform(k3, (H, 1), jnp.float32, -lim2, lim2)
    b2 = jax.random.uniform(k4, (1,), jnp.float32, -lim2, lim2)
    return {"a": a, "b": b, "c": c, "w1": w1, "b1": b1, "w2": w2, "b2": b2}


def reference_forward(x, params):
    """Pure-JAX reference mirroring the PyTorch module exactly."""
    a = params["a"][None]
    b = params["b"][None]
    c = params["c"][None]
    mf = 1.0 / (1.0 + jnp.abs((x[:, :, None] - c) / a) ** (2.0 * b))
    combined = mf.reshape(x.shape[0], -1)
    h = jnp.maximum(combined @ params["w1"] + params["b1"], 0.0)
    return h @ params["w2"] + params["b2"]


if __name__ == "__main__":
    # batch, in_features, mf_per_input, hidden_dim
    B, F, M, H = 256, 4, 3, 16

    key = jax.random.PRNGKey(0)
    k_x, k_p = jax.random.split(key)
    x = jax.random.normal(k_x, (B, F), dtype=jnp.float32)
    params = init_params(k_p, F, M, H)

    # Default tiling: lanes=256 -> block_b=128, grid=(2,) so the pipeline and
    # (on v7x) the two-TensorCore split are both exercised at this small size.
    out = simple_anfis_forward(x, params)
    out = jax.block_until_ready(out)

    ref = reference_forward(x, params)
    assert out.shape == (B, 1)
    # exp(b*log(z^2+eps)) vs |z|**(2b) differ by a few ulps; the approx
    # reciprocal adds ~2^-12 relative error on the memberships, which maps to
    # <~1e-3 absolute at the output for these weight scales.
    max_err = jnp.max(jnp.abs(out - ref))
    assert jnp.allclose(out, ref, atol=2e-3, rtol=2e-3), (max_err, out[:4], ref[:4])
    print("KERNEL_OK")
</pallas_src>

<mosaic_0001>
module attributes {stable_mosaic.version = 11 : i64} {
  func.func @_anfis_kernel(%arg0: i32, %arg1: memref<12x128xf32, #tpu.memory_space<vmem>>, %arg2: memref<12x3xf32, #tpu.memory_space<vmem>>, %arg3: memref<16x12xf32, #tpu.memory_space<vmem>>, %arg4: memref<16x2xf32, #tpu.memory_space<vmem>>, %arg5: memref<1x1xf32, #tpu.memory_space<smem>>, %arg6: memref<1x128xf32, #tpu.memory_space<vmem>>) attributes {dimension_semantics = [#tpu.dimension_semantics<parallel>], iteration_bounds = array<i64: 2>, scalar_prefetch = 0 : i64, scratch_operands = 0 : i64, tpu.core_type = #tpu.core_type<tc>, window_params = [{transform_indices = @transform_0, window_bounds = array<i64: 12, 128>}, {pipeline_mode = #tpu.pipeline_mode<synchronous>, transform_indices = @transform_1, window_bounds = array<i64: 12, 3>}, {pipeline_mode = #tpu.pipeline_mode<synchronous>, transform_indices = @transform_2, window_bounds = array<i64: 16, 12>}, {pipeline_mode = #tpu.pipeline_mode<synchronous>, transform_indices = @transform_3, window_bounds = array<i64: 16, 2>}, {transform_indices = @transform_4, window_bounds = array<i64: 1, 1>}, {transform_indices = @transform_5, window_bounds = array<i64: 1, 128>}]} {
    %c0 = arith.constant 0 : index
    %c0_0 = arith.constant 0 : index
    %0 = vector.load %arg1[%c0, %c0_0] : memref<12x128xf32, #tpu.memory_space<vmem>>, vector<12x128xf32>
    %c0_1 = arith.constant 0 : index
    %c0_2 = arith.constant 0 : index
    %1 = vector.load %arg2[%c0_1, %c0_2] : memref<12x3xf32, #tpu.memory_space<vmem>>, vector<12x1xf32>
    %c0_3 = arith.constant 0 : index
    %c1 = arith.constant 1 : index
    %2 = vector.load %arg2[%c0_3, %c1] : memref<12x3xf32, #tpu.memory_space<vmem>>, vector<12x1xf32>
    %c0_4 = arith.constant 0 : index
    %c2 = arith.constant 2 : index
    %3 = vector.load %arg2[%c0_4, %c2] : memref<12x3xf32, #tpu.memory_space<vmem>>, vector<12x1xf32>
    %4 = vector.broadcast %3 : vector<12x1xf32> to vector<12x128xf32>
    %5 = arith.subf %0, %4 : vector<12x128xf32>
    %6 = vector.broadcast %1 : vector<12x1xf32> to vector<12x128xf32>
    %7 = arith.mulf %5, %6 : vector<12x128xf32>
    %8 = arith.mulf %7, %7 : vector<12x128xf32>
    %cst = arith.constant 1.000000e-30 : f32
    %9 = vector.broadcast %cst : f32 to vector<12x128xf32>
    %10 = arith.addf %8, %9 : vector<12x128xf32>
    %11 = math.log %10 : vector<12x128xf32>
    %12 = vector.broadcast %2 : vector<12x1xf32> to vector<12x128xf32>
    %13 = arith.mulf %12, %11 : vector<12x128xf32>
    %14 = math.exp %13 : vector<12x128xf32>
    %cst_5 = arith.constant 1.000000e+00 : f32
    %15 = vector.broadcast %cst_5 : f32 to vector<12x128xf32>
    %16 = arith.addf %15, %14 : vector<12x128xf32>
    %17 = tpu.reciprocal %16 {approx = true} : vector<12x128xf32> -> vector<12x128xf32>
    %c0_6 = arith.constant 0 : index
    %c0_7 = arith.constant 0 : index
    %18 = vector.load %arg3[%c0_6, %c0_7] : memref<16x12xf32, #tpu.memory_space<vmem>>, vector<16x12xf32>
    %cst_8 = arith.constant dense<0.000000e+00> : vector<16x128xf32>
    %19 = tpu.matmul %18, %17, %cst_8 {dimension_numbers = #tpu.dot_dimension_numbers<[1], [0], [0], [1], [0, 0, 1, 1], [], []>} : vector<16x12xf32>, vector<12x128xf32>, vector<16x128xf32> -> vector<16x128xf32>
    %c0_9 = arith.constant 0 : index
    %c0_10 = arith.constant 0 : index
    %20 = vector.load %arg4[%c0_9, %c0_10] : memref<16x2xf32, #tpu.memory_space<vmem>>, vector<16x1xf32>
    %21 = vector.broadcast %20 : vector<16x1xf32> to vector<16x128xf32>
    %22 = arith.addf %19, %21 : vector<16x128xf32>
    %cst_11 = arith.constant 0.000000e+00 : f32
    %23 = vector.broadcast %cst_11 : f32 to vector<16x128xf32>
    %24 = arith.maximumf %22, %23 : vector<16x128xf32>
    %c0_12 = arith.constant 0 : index
    %c1_13 = arith.constant 1 : index
    %25 = vector.load %arg4[%c0_12, %c1_13] : memref<16x2xf32, #tpu.memory_space<vmem>>, vector<16x1xf32>
    %26 = vector.broadcast %25 : vector<16x1xf32> to vector<16x128xf32>
    %27 = arith.mulf %24, %26 : vector<16x128xf32>
    %cst_14 = arith.constant dense<0.000000e+00> : vector<128xf32>
    %28 = vector.multi_reduction <add>, %27, %cst_14 [0] : vector<16x128xf32> to vector<128xf32>
    %29 = vector.shape_cast %28 : vector<128xf32> to vector<1x128xf32>
    %c0_15 = arith.constant 0 : index
    %c0_16 = arith.constant 0 : index
    %30 = memref.load %arg5[%c0_15, %c0_16] : memref<1x1xf32, #tpu.memory_space<smem>>
    %31 = vector.broadcast %30 : f32 to vector<1x128xf32>
    %32 = arith.addf %29, %31 : vector<1x128xf32>
    %c0_17 = arith.constant 0 : index
    %c0_18 = arith.constant 0 : index
    %33 = vector.load %arg6[%c0_17, %c0_18] : memref<1x128xf32, #tpu.memory_space<vmem>>, vector<1x128xf32>
    tpu.vector_store %arg6[%c0_17, %c0_18], %32 {strides = array<i32>} : memref<1x128xf32, #tpu.memory_space<vmem>>, vector<1x128xf32>,
    return
  }
  func.func @transform_0(%arg0: i32) -> (i32, i32) {
    %c0_i32 = arith.constant 0 : i32
    %c0_i32_0 = arith.constant 0 : i32
    return %c0_i32, %arg0 : i32, i32
  }
  func.func @transform_1(%arg0: i32) -> (i32, i32) {
    %c0_i32 = arith.constant 0 : i32
    %c0_i32_0 = arith.constant 0 : i32
    %c0_i32_1 = arith.constant 0 : i32
    return %c0_i32, %c0_i32_0 : i32, i32
  }
  func.func @transform_2(%arg0: i32) -> (i32, i32) {
    %c0_i32 = arith.constant 0 : i32
    %c0_i32_0 = arith.constant 0 : i32
    %c0_i32_1 = arith.constant 0 : i32
    return %c0_i32, %c0_i32_0 : i32, i32
  }
  func.func @transform_3(%arg0: i32) -> (i32, i32) {
    %c0_i32 = arith.constant 0 : i32
    %c0_i32_0 = arith.constant 0 : i32
    %c0_i32_1 = arith.constant 0 : i32
    return %c0_i32, %c0_i32_0 : i32, i32
  }
  func.func @transform_4(%arg0: i32) -> (i32, i32) {
    %c0_i32 = arith.constant 0 : i32
    %c0_i32_0 = arith.constant 0 : i32
    %c0_i32_1 = arith.constant 0 : i32
    return %c0_i32, %c0_i32_0 : i32, i32
  }
  func.func @transform_5(%arg0: i32) -> (i32, i32) {
    %c0_i32 = arith.constant 0 : i32
    %c0_i32_0 = arith.constant 0 : i32
    return %c0_i32, %arg0 : i32, i32
  }
}

</mosaic_0001>

<llo_original>
// kernel: tpu_custom_call.1
$region0: #{tpu_custom_call.1}
  #allocation0 [shape = 'u32[]', space=smem, size = 0x4, offset = 0x4, fixed_abs, tag = 'smem constant byte address 0x4 - core index']
  #allocation1 [shape = 'u32[144,128]{1,0:T(1,128)}', space=vmem, size = 0x12000, scoped, tag = 'internal scratch']
  #allocation2 [shape = 'f32[1,1]{1,0:T(1,128)S(6)}', space=smem, size = 0x200, scoped, tag = 'scoped memory for tpu_custom_call.1']
  %s0 = inlined_call_operand.vmem [shape: f32[12,256], index: 0, kind: input, shape index: {}]
  %s1 = inlined_call_operand.vmem [shape: f32[12,3], index: 1, kind: input, shape index: {}]
  %s2 = inlined_call_operand.vmem [shape: f32[16,12], index: 2, kind: input, shape index: {}]
  %s3 = inlined_call_operand.vmem [shape: f32[16,2], index: 3, kind: input, shape index: {}]
  %s4 = inlined_call_operand.<no memory space> [shape: f32[1,1], index: 4, kind: input, shape index: {}]
  %s5 = inlined_call_operand.hbm [shape: f32[1,256], index: 5, kind: output, shape index: {}]
  %s6 = sld [smem:[#allocation0]]
  $region91: #{tpu_custom_call.1} parent=0
    _
  %s8 = ssub.s32 1, %s6
  %s9 = scalar_select 0, %s8, %s6
  %10 = sst [smem:[#allocation2]] %s4
  $region1: #{tpu_custom_call.1} parent=0
    #allocation3 [shape = 'u8[16384]{0}', space=vmem, size = 0x4000, scoped, tag = 'input window, operand 0']
    #allocation4 [shape = 'u8[1024]{0}', space=vmem, size = 0x400, scoped, tag = 'output window, operand 0']
    #allocation5 [shape = 's32[2]{0}', space=sflag, size = 0x8, scoped, tag = 'scoped memory for tpu_custom_call.1']
    %11 = vsyncpa [#allocation5], 0
    %s12 = scalar_lea.sflag [#allocation5], 1
    %13 = vsyncpa %s12, 0
    loop: start=0, step=1, limit=4
    $region2: #{tpu_custom_call.1} parent=1 // loop_pre_header
      _
    $region3: #{tpu_custom_call.1} parent=1 // loop_header
      %s15 = sphi 0, %s19
      %p16 = scmp.ge.s32.totalorder %s15, 4
      %s25 = sphi 0, %s27
      %s28 = sphi 0, %s25
      %s29 = sphi 0, %s28
      %s45 = sphi 0, %s29
      %s49 = sphi 0, %s49
      %s51 = sphi 0, %s49
      %s52 = sphi 0, %s51
      %s66 = sphi 0, %s52
      %s70 = sphi 0, %s70
      %s72 = sphi 0, %s70
      %s73 = sphi 0, %s72
      %s87 = sphi 0, %s73
      %s91 = sphi 0, %s91
      %s93 = sphi 0, %s91
      %s94 = sphi 0, %s93
      %s108 = sphi 0, %s94
      %s112 = sphi 0, %s112
      %s114 = sphi 0, %s112
      %s115 = sphi 0, %s114
      %s129 = sphi 0, %s115
      %s135 = sphi 0, %s137
      %s138 = sphi 0, %s135
      %s139 = sphi 0, %s138
      %s155 = sphi 0, %s139
    $region4: #{tpu_custom_call.1} parent=1 // loop_header_branch
      %18 = sbr.rel (%p16) target = $region8
    $region5: #{tpu_custom_call.1} parent=1 // loop_body
      %s20 = ssub.s32 %s15, 1
      %s21 = ssub.s32 %s15, 2
      %s22 = sadd.s32 %s15, 1
      %s23 = ssub.s32 %s15, %s22
      %p24 = scmp.eq.s32.totalorder %s23, 0
      %s26 = sadd.s32 %s25, 1
      %s27 = scalar_select %p24, %s25, %s26
      %p30 = pneg %p24
      %p31 = scmp.eq.s32.totalorder %s15, 1
      %p32 = por %p30, %p31
      %p33 = scmp.ne.s32.totalorder %s25, %s28
      %p34 = scmp.eq.s32.totalorder %s15, 0
      %p35 = por %p33, %p34
      %p36 = scmp.ne.s32.totalorder %s25, %s28
      %p37 = scmp.eq.s32.totalorder %s20, 1
      %p38 = por %p36, %p37
      %p39 = scmp.ne.s32.totalorder %s28, %s29
      %p40 = scmp.eq.s32.totalorder %s20, 0
      %p41 = por %p39, %p40
      %p42 = scmp.ne.s32.totalorder %s28, %s29
      %p43 = scmp.eq.s32.totalorder %s21, 1
      %p44 = por %p42, %p43
      %p46 = scmp.ne.s32.totalorder %s29, %s45
      %p47 = scmp.eq.s32.totalorder %s21, 0
      %p48 = por %p46, %p47
      %s50 = sadd.s32 %s49, 1
      %p53 = scmp.eq.s32.totalorder %s15, 1
      %p54 = scmp.ne.s32.totalorder %s49, %s51
      %p55 = scmp.eq.s32.totalorder %s15, 0
      %p56 = por %p54, %p55
      %p57 = scmp.ne.s32.totalorder %s49, %s51
      %p58 = scmp.eq.s32.totalorder %s20, 1
      %p59 = por %p57, %p58
      %p60 = scmp.ne.s32.totalorder %s51, %s52
      %p61 = scmp.eq.s32.totalorder %s20, 0
      %p62 = por %p60, %p61
      %p63 = scmp.ne.s32.totalorder %s51, %s52
      %p64 = scmp.eq.s32.totalorder %s21, 1
      %p65 = por %p63, %p64
      %p67 = scmp.ne.s32.totalorder %s52, %s66
      %p68 = scmp.eq.s32.totalorder %s21, 0
      %p69 = por %p67, %p68
      %s71 = sadd.s32 %s70, 1
      %p74 = scmp.eq.s32.totalorder %s15, 1
      %p75 = scmp.ne.s32.totalorder %s70, %s72
      %p76 = scmp.eq.s32.totalorder %s15, 0
      %p77 = por %p75, %p76
      %p78 = scmp.ne.s32.totalorder %s70, %s72
      %p79 = scmp.eq.s32.totalorder %s20, 1
      %p80 = por %p78, %p79
      %p81 = scmp.ne.s32.totalorder %s72, %s73
      %p82 = scmp.eq.s32.totalorder %s20, 0
      %p83 = por %p81, %p82
      %p84 = scmp.ne.s32.totalorder %s72, %s73
      %p85 = scmp.eq.s32.totalorder %s21, 1
      %p86 = por %p84, %p85
      %p88 = scmp.ne.s32.totalorder %s73, %s87
      %p89 = scmp.eq.s32.totalorder %s21, 0
      %p90 = por %p88, %p89
      %s92 = sadd.s32 %s91, 1
      %p95 = scmp.eq.s32.totalorder %s15, 1
      %p96 = scmp.ne.s32.totalorder %s91, %s93
      %p97 = scmp.eq.s32.totalorder %s15, 0
      %p98 = por %p96, %p97
      %p99 = scmp.ne.s32.totalorder %s91, %s93
      %p100 = scmp.eq.s32.totalorder %s20, 1
      %p101 = por %p99, %p100
      %p102 = scmp.ne.s32.totalorder %s93, %s94
      %p103 = scmp.eq.s32.totalorder %s20, 0
      %p104 = por %p102, %p103
      %p105 = scmp.ne.s32.totalorder %s93, %s94
      %p106 = scmp.eq.s32.totalorder %s21, 1
      %p107 = por %p105, %p106
      %p109 = scmp.ne.s32.totalorder %s94, %s108
      %p110 = scmp.eq.s32.totalorder %s21, 0
      %p111 = por %p109, %p110
      %s113 = sadd.s32 %s112, 1
      %p116 = scmp.eq.s32.totalorder %s15, 1
      %p117 = scmp.ne.s32.totalorder %s112, %s114
      %p118 = scmp.eq.s32.totalorder %s15, 0
      %p119 = por %p117, %p118
      %p120 = scmp.ne.s32.totalorder %s112, %s114
      %p121 = scmp.eq.s32.totalorder %s20, 1
      %p122 = por %p120, %p121
      %p123 = scmp.ne.s32.totalorder %s114, %s115
      %p124 = scmp.eq.s32.totalorder %s20, 0
      %p125 = por %p123, %p124
      %p126 = scmp.ne.s32.totalorder %s114, %s115
      %p127 = scmp.eq.s32.totalorder %s21, 1
      %p128 = por %p126, %p127
      %p130 = scmp.ne.s32.totalorder %s115, %s129
      %p131 = scmp.eq.s32.totalorder %s21, 0
      %p132 = por %p130, %p131
      %s133 = ssub.s32 %s15, %s22
      %p134 = scmp.eq.s32.totalorder %s133, 0
      %s136 = sadd.s32 %s135, 1
      %s137 = scalar_select %p134, %s135, %s136
      %p140 = pneg %p134
      %p141 = scmp.eq.s32.totalorder %s15, 1
      %p142 = por %p140, %p141
      %p143 = scmp.ne.s32.totalorder %s135, %s138
      %p144 = scmp.eq.s32.totalorder %s15, 0
      %p145 = por %p143, %p144
      %p146 = scmp.ne.s32.totalorder %s135, %s138
      %p147 = scmp.eq.s32.totalorder %s20, 1
      %p148 = por %p146, %p147
      %p149 = scmp.ne.s32.totalorder %s138, %s139
      %p150 = scmp.eq.s32.totalorder %s20, 0
      %p151 = por %p149, %p150
      %p152 = scmp.ne.s32.totalorder %s138, %s139
      %p153 = scmp.eq.s32.totalorder %s21, 1
      %p154 = por %p152, %p153
      %p156 = scmp.ne.s32.totalorder %s139, %s155
      %p157 = scmp.eq.s32.totalorder %s21, 0
      %p158 = por %p156, %p157
      %p159 = scmp.le.s32.totalorder 1, %s15
      %p160 = scmp.lt.s32.totalorder %s15, 3
      %p161 = pnand %p159, %p160
      %p162 = pneg %p161
      // Predicated region
      $region9: #{tpu_custom_call.1} parent=5 // pred_check
        _
      $region10: #{tpu_custom_call.1} parent=5 // pred_check_branch
        %164 = sbr.rel (%p161) target = $region12
      $region11: #{tpu_custom_call.1} parent=5 // pred_region
        %s165 = ssub.s32 %s15, 1
        // Predicated region
        $region13: #{tpu_custom_call.1} parent=11 // pred_check
          %p166 = pneg %p62
        $region14: #{tpu_custom_call.1} parent=11 // pred_check_branch
          %168 = sbr.rel (%p166) target = $region16
        $region15: #{tpu_custom_call.1} parent=11 // pred_region
          _
        $region16: #{tpu_custom_call.1} parent=11 // pred_fallthru
          _
        // Predicated region
        $region17: #{tpu_custom_call.1} parent=11 // pred_check
          %p169 = pneg %p83
        $region18: #{tpu_custom_call.1} parent=11 // pred_check_branch
          %171 = sbr.rel (%p169) target = $region20
        $region19: #{tpu_custom_call.1} parent=11 // pred_region
          _
        $region20: #{tpu_custom_call.1} parent=11 // pred_fallthru
          _
        // Predicated region
        $region21: #{tpu_custom_call.1} parent=11 // pred_check
          %p172 = pneg %p104
        $region22: #{tpu_custom_call.1} parent=11 // pred_check_branch
          %174 = sbr.rel (%p172) target = $region24
        $region23: #{tpu_custom_call.1} parent=11 // pred_region
          _
        $region24: #{tpu_custom_call.1} parent=11 // pred_fallthru
          _
        // Predicated region
        $region25: #{tpu_custom_call.1} parent=11 // pred_check
          %p175 = pneg %p125
        $region26: #{tpu_custom_call.1} parent=11 // pred_check_branch
          %177 = sbr.rel (%p175) target = $region28
        $region27: #{tpu_custom_call.1} parent=11 // pred_region
          _
        $region28: #{tpu_custom_call.1} parent=11 // pred_fallthru
          _
      $region12: #{tpu_custom_call.1} parent=5 // pred_fallthru
        _
      %p178 = scmp.lt.s32.totalorder %s15, 2
      // Predicated region
      $region29: #{tpu_custom_call.1} parent=5 // pred_check
        %p179 = pneg %p178
      $region30: #{tpu_custom_call.1} parent=5 // pred_check_branch
        %181 = sbr.rel (%p179) target = $region32
      $region31: #{tpu_custom_call.1} parent=5 // pred_region
        // Predicated region
        $region33: #{tpu_custom_call.1} parent=31 // pred_check
          %p182 = pneg %p35
        $region34: #{tpu_custom_call.1} parent=31 // pred_check_branch
          %184 = sbr.rel (%p182) target = $region36
        $region35: #{tpu_custom_call.1} parent=31 // pred_region
          %s185 = sand.u32 %s25, 1
          %s186 = sand.u32 %s25, 1
          %s187 = smul.addr %s186, 16
          %s188 = scalar_lea.vmem [#allocation3], %s187
          %s189 = smul.addr %s15, 8
          %s190 = scalar_lea.vmem %s0, %s189
          // Predicated region
          $region37: #{tpu_custom_call.1} parent=35 // pred_check
            _
          $region38: #{tpu_custom_call.1} parent=35 // pred_check_branch
            %192 = sbr.rel (0) target = $region40
          $region39: #{tpu_custom_call.1} parent=35 // pred_region
            // Predicated region
            $region41: #{tpu_custom_call.1} parent=39 // pred_check
              _
            $region42: #{tpu_custom_call.1} parent=39 // pred_check_branch
              %194 = sbr.rel (0) target = $region44
            $region43: #{tpu_custom_call.1} parent=39 // pred_region
              // Predicated region
              $region56: #{tpu_custom_call.1} parent=43 // pred_check
                _
              $region57: #{tpu_custom_call.1} parent=43 // pred_check_branch
                %211 = sbr.rel (0) target = $region59
              $region58: #{tpu_custom_call.1} parent=43 // pred_region
                loop: start=0, step=1, limit=1
                $region60: #{tpu_custom_call.1} parent=58 // loop_pre_header
                  _
                $region61: #{tpu_custom_call.1} parent=58 // loop_header
                  %s213 = sphi 0, %s217
                  %p214 = scmp.ge.s32.totalorder %s213, 1
                  %s218 = sphi %s190, %s190
                  %s219 = sphi %s188, %s188
                $region62: #{tpu_custom_call.1} parent=58 // loop_header_branch
                  %216 = sbr.rel (%p214) target = $region66
                $region63: #{tpu_custom_call.1} parent=58 // loop_body
                  %v220 = vld [vmem:[%s218] sm:$0xff]
                  %221 = vst [vmem:[%s219] sm:$0xff] %v220
                  %v222 = vld [vmem:[%s218 + $0x10] sm:$0xff]
                  %223 = vst [vmem:[%s219 + $0x8] sm:$0xff] %v222
                $region64: #{tpu_custom_call.1} parent=58 // loop_footer
                  %s217 = sadd.s32 1, %s213
                $region65: #{tpu_custom_call.1} parent=58 // loop_footer_branch
                  %212 = sbr.rel target = $region61
                $region66: #{tpu_custom_call.1} parent=58 // loop_exit
                  _
              $region59: #{tpu_custom_call.1} parent=43 // pred_fallthru
                _
              // Predicated region
              $region67: #{tpu_custom_call.1} parent=43 // pred_check
                _
              $region68: #{tpu_custom_call.1} parent=43 // pred_check_branch
                %225 = sbr.rel target = $region70
              $region69: #{tpu_custom_call.1} parent=43 // pred_region
                _
              $region70: #{tpu_custom_call.1} parent=43 // pred_fallthru
                _
            $region44: #{tpu_custom_call.1} parent=39 // pred_fallthru
              _
            // Predicated region
            $region45: #{tpu_custom_call.1} parent=39 // pred_check
              _
            $region46: #{tpu_custom_call.1} parent=39 // pred_check_branch
              %196 = sbr.rel target = $region48
            $region47: #{tpu_custom_call.1} parent=39 // pred_region
              loop: start=0, step=1, limit=1
              $region49: #{tpu_custom_call.1} parent=47 // loop_pre_header
                _
              $region50: #{tpu_custom_call.1} parent=47 // loop_header
                %s199 = sphi 0, %s203
                %p200 = scmp.ge.s32.totalorder %s199, 1
                %s204 = sphi %s190, %s190
                %s205 = sphi %s188, %s188
              $region51: #{tpu_custom_call.1} parent=47 // loop_header_branch
                %202 = sbr.rel (%p200) target = $region55
              $region52: #{tpu_custom_call.1} parent=47 // loop_body
                %v206 = vld [vmem:[%s204] sm:$0xff]
                %207 = vst [vmem:[%s205] sm:$0xff] %v206
                %v208 = vld [vmem:[%s204 + $0x10] sm:$0xff]
                %209 = vst [vmem:[%s205 + $0x8] sm:$0xff] %v208
              $region53: #{tpu_custom_call.1} parent=47 // loop_footer
                %s203 = sadd.s32 1, %s199
              $region54: #{tpu_custom_call.1} parent=47 // loop_footer_branch
                %198 = sbr.rel target = $region50
              $region55: #{tpu_custom_call.1} parent=47 // loop_exit
                _
            $region48: #{tpu_custom_call.1} parent=39 // pred_fallthru
              _
          $region40: #{tpu_custom_call.1} parent=35 // pred_fallthru
            _
          %226 = vnop
        $region36: #{tpu_custom_call.1} parent=31 // pred_fallthru
          _
      $region32: #{tpu_custom_call.1} parent=5 // pred_fallthru
        _
      %p227 = scmp.le.s32.totalorder 1, %s15
      %p228 = scmp.lt.s32.totalorder %s15, 3
      %p229 = pnand %p227, %p228
      %p230 = pneg %p229
      // Predicated region
      $region71: #{tpu_custom_call.1} parent=5 // pred_check
        _
      $region72: #{tpu_custom_call.1} parent=5 // pred_check_branch
        %232 = sbr.rel (%p229) target = $region74
      $region73: #{tpu_custom_call.1} parent=5 // pred_region
        %s233 = ssub.s32 %s15, 1
        %s234 = sand.u32 %s28, 1
        %s235 = sand.u32 %s28, 1
        %s236 = smul.addr %s235, 16
        %s237 = scalar_lea.vmem [#allocation3], %s236
        // Predicated region
        $region75: #{tpu_custom_call.1} parent=73 // pred_check
          %p238 = pneg %p41
        $region76: #{tpu_custom_call.1} parent=73 // pred_check_branch
          %240 = sbr.rel (%p238) target = $region78
        $region77: #{tpu_custom_call.1} parent=73 // pred_region
          _
        $region78: #{tpu_custom_call.1} parent=73 // pred_fallthru
          _
        %s241 = sand.u32 %s28, 1
        %s242 = sand.u32 %s28, 1
        %s243 = smul.addr %s242, 16
        %s244 = scalar_lea.vmem [#allocation3], %s243
        %p245 = pneg %p41
        %p246 = pneg %p38
        %p247 = pneg %p62
        %p248 = pneg %p59
        %p249 = pneg %p83
        %p250 = pneg %p80
        %p251 = pneg %p104
        %p252 = pneg %p101
        %p253 = pneg %p125
        %p254 = pneg %p122
        %p255 = pneg %p151
        %p256 = pneg %p148
        %s257 = sand.u32 %s138, 1
        %s258 = scalar_lea.sflag [#allocation5], %s257
        %s259 = sand.u32 %s138, 1
        %s260 = scalar_lea.vmem [#allocation4], %s259
        %v261 = vld [vmem:[%s237] sm:$0xff]
        %v262 = vld [vmem:[%s237 + $0x8] sm:$0xf]
        %v263 = vld [vmem:[%s1] sm:$0xff]
        %v264 = vld [vmem:[%s1 + $0x8] sm:$0xf]
        %266 = vset.pattern.permute.xlu0 2
        %267 = vperm.xlu0 %266, %v263
        %v268 = vpop.permute.xlu0 %267
        %271 = vset.pattern.permute.xlu0 2
        %272 = vperm.xlu0 %271, %v264
        %v273 = vpop.permute.xlu0 %272
        %v275 = vsub.f32 %v261, %v268
        %v276 = vsub.f32 %v262, %v273
        %277 = vset.pattern.permute.xlu0 0
        %278 = vperm.xlu0 %277, %v263
        %v279 = vpop.permute.xlu0 %278
        %281 = vset.pattern.permute.xlu0 0
        %282 = vperm.xlu0 %281, %v264
        %v283 = vpop.permute.xlu0 %282
        %v285 = vmul.f32 %v275, %v279
        %v286 = vmul.f32 %v276, %v283
        %v287 = vmul.f32 %v285, %v285
        %v288 = vmul.f32 %v286, %v286
        %v289 = vadd.f32 %v287, 1e-30
        %v290 = vadd.f32 %v288, 1e-30
        %v291 = vlog2.pop %v289
        %v292 = vmul.f32 %v291, 0.6931472
        %v293 = vlog2.pop %v290
        %v294 = vmul.f32 %v293, 0.6931472
        %295 = vset.pattern.permute.xlu0 1
        %296 = vperm.xlu0 %295, %v263
        %v297 = vpop.permute.xlu0 %296
        %299 = vset.pattern.permute.xlu0 1
        %300 = vperm.xlu0 %299, %v264
        %v301 = vpop.permute.xlu0 %300
        %v303 = vmul.f32 %v297, %v292
        %v304 = vmul.f32 %v301, %v294
        %v305 = vmul.f32 %v303, 1.442695
        %v306 = vpow.pop %v305
        %v307 = vmul.f32 %v304, 1.442695
        %v308 = vpow.pop %v307
        %v309 = vadd.f32 %v306, 1.0
        %v310 = vadd.f32 %v308, 1.0
        %v311 = vrcp.pop %v309
        %v312 = vrcp.pop %v310
        %v313 = vld [vmem:[%s2] sm:$0xff]
        %v314 = vld [vmem:[%s2 + $0x8] sm:$0xff]
        %v315 = vld [vmem:[%s3] sm:$0xff]
        %v316 = vld [vmem:[%s3 + $0x8] sm:$0xff]
        %318 = vset.pattern.permute.xlu0 0
        %319 = vperm.xlu0 %318, %v315
        %v320 = vpop.permute.xlu0 %319
        %323 = vset.pattern.permute.xlu0 0
        %324 = vperm.xlu0 %323, %v316
        %v325 = vpop.permute.xlu0 %324
        %vm327 = vcmask 97280
        %v329 = vsel %vm327, %v313, 0
        %v332 = vsel %vm327, %v314, 0
        %vm334 = vcmask 1043456
        %v336 = vsel %vm334, %v312, 0
        %338 = vmatprep.subr.mxu0 0.0
        %339 = vmatpush1.msra.mxu0 %v311
        %340 = vmatprep.subr.mxu0 0.0
        %341 = vmatpush1.msra.mxu0 %v336
        %342 = vmatprep.subr.mxu0 0.0
        %343 = vmatpush1.msra.mxu0 0.0
        %344 = vmatprep.subr.mxu0 0.0
        %345 = vmatpush1.msra.mxu0 0.0
        %346 = vmatprep.subr.mxu0 0.0
        %347 = vmatpush1.msra.mxu0 0.0
        %348 = vmatprep.subr.mxu0 0.0
        %349 = vmatpush1.msra.mxu0 0.0
        %350 = vmatprep.subr.mxu0 0.0
        %351 = vmatpush1.msra.mxu0 0.0
        %352 = vmatprep.subr.mxu0 0.0
        %353 = vmatpush1.msra.mxu0 0.0
        %354 = vmatprep.subr.mxu0 0.0
        %355 = vmatpush1.msra.mxu0 0.0
        %356 = vmatprep.subr.mxu0 0.0
        %357 = vmatpush1.msra.mxu0 0.0
        %358 = vmatprep.subr.mxu0 0.0
        %359 = vmatpush1.msra.mxu0 0.0
        %360 = vmatprep.subr.mxu0 0.0
        %361 = vmatpush1.msra.mxu0 0.0
        %362 = vmatprep.subr.mxu0 0.0
        %363 = vmatpush1.msra.mxu0 0.0
        %364 = vmatprep.subr.mxu0 0.0
        %365 = vmatpush1.msra.mxu0 0.0
        %366 = vmatprep.subr.mxu0 0.0
        %367 = vmatpush1.msra.mxu0 0.0
        %368 = vmatprep.subr.mxu0 0.0
        %369 = vmatpush1.msra.mxu0 0.0
        %370 = vmatprep.subr.mxu0 0.0
        %371 = vmatpush1.msra.mxu0 0.0
        %372 = vmatprep.subr.mxu0 0.0
        %373 = vmatpush1.msra.mxu0 0.0
        %374 = vmatprep.subr.mxu0 0.0
        %375 = vmatpush1.msra.mxu0 0.0
        %376 = vmatprep.subr.mxu0 0.0
        %377 = vmatpush1.msra.mxu0 0.0
        %378 = vmatprep.subr.mxu0 0.0
        %379 = vmatpush1.msra.mxu0 0.0
        %380 = vmatprep.subr.mxu0 0.0
        %381 = vmatpush1.msra.mxu0 0.0
        %382 = vmatprep.subr.mxu0 0.0
        %383 = vmatpush1.msra.mxu0 0.0
        %384 = vmatprep.subr.mxu0 0.0
        %385 = vmatpush1.msra.mxu0 0.0
        %386 = vmatprep.subr.mxu0 0.0
        %387 = vmatpush1.msra.mxu0 0.0
        %388 = vmatprep.subr.mxu0 0.0
        %389 = vmatpush1.msra.mxu0 0.0
        %390 = vmatprep.subr.mxu0 0.0
        %391 = vmatpush1.msra.mxu0 0.0
        %392 = vmatprep.subr.mxu0 0.0
        %393 = vmatpush1.msra.mxu0 0.0
        %394 = vmatprep.subr.mxu0 0.0
        %395 = vmatpush1.msra.mxu0 0.0
        %396 = vmatprep.subr.mxu0 0.0
        %397 = vmatpush1.msra.mxu0 0.0
        %398 = vmatprep.subr.mxu0 0.0
        %399 = vmatpush1.msra.mxu0 0.0
        %400 = vmatprep.subr.mxu0 0.0
        %401 = vmatpush1.msra.mxu0 0.0
        %402 = vmatprep.mubr.f32.mxu0 0.0
        %403 = vmatmul.mubr.f32.gmra.mrb[0].mxu0 %v329
        %v404 = vpop.f32.mrb[0].mxu0
        %v405 = vadd.f32 %v320, %v404
        %v406 = vpop.f32.mrb[0].mxu0
        %407 = vmatprep.mubr.f32.mxu0 0.0
        %408 = vmatmul.mubr.f32.gmra.mrb[0].mxu0 %v332
        %v409 = vpop.f32.mrb[0].mxu0
        %v410 = vadd.f32 %v325, %v409
        %v411 = vpop.f32.mrb[0].mxu0
        %412 = vdwg.mxu0
        %v413 = vmax.f32 %v405, 0.0
        %v414 = vmax.f32 %v410, 0.0
        %415 = vset.pattern.permute.xlu0 1
        %416 = vperm.xlu0 %415, %v315
        %v417 = vpop.permute.xlu0 %416
        %419 = vset.pattern.permute.xlu0 1
        %420 = vperm.xlu0 %419, %v316
        %v421 = vpop.permute.xlu0 %420
        %v423 = vmul.f32 %v413, %v417
        %v424 = vmul.f32 %v414, %v421
        %v425 = vadd.f32 %v423, %v424
        %v426 = vrot.slane %v425, 4
        %v427 = vadd.f32 %v425, %v426
        %v428 = vrot.slane %v427, 2
        %v429 = vadd.f32 %v427, %v428
        %v430 = vrot.slane %v429, 1
        %v431 = vadd.f32 %v429, %v430
        %s432 = sld [smem:[#allocation2]]
        %v433 = vstv %s432
        %v434 = vadd.f32 %v431, %v433
        %435 = vst [vmem:[%s260] sm:$0x1] %v434
        %s436 = sand.u32 %s138, 1
        %s437 = scalar_lea.sflag [#allocation5], %s436
        %s438 = sand.u32 %s138, 1
        %s439 = scalar_lea.vmem [#allocation4], %s438
        // Predicated region
        $region79: #{tpu_custom_call.1} parent=73 // pred_check
          %p440 = pneg %p148
        $region80: #{tpu_custom_call.1} parent=73 // pred_check_branch
          %442 = sbr.rel (%p440) target = $region82
        $region81: #{tpu_custom_call.1} parent=73 // pred_region
          %s444 = ssub.s32 16, 16
          %445 = vsyncadd %s437, %s444
          %s446 = smul.addr %s20, 16
          %s447 = scalar_lea.hbm %s5, %s446
          %s449 = sshll.u32 %s439, 4
          %s450 = int_to_ptr.vmem [resolvable:$true] %s449
          %452 = dma.vmem_to_hbm [thread:$0]  %s450, 16, %s447, %s437
        $region82: #{tpu_custom_call.1} parent=73 // pred_fallthru
          _
      $region74: #{tpu_custom_call.1} parent=5 // pred_fallthru
        _
      %p453 = scmp.le.s32.totalorder 2, %s15
      // Predicated region
      $region83: #{tpu_custom_call.1} parent=5 // pred_check
        %p454 = pneg %p453
      $region84: #{tpu_custom_call.1} parent=5 // pred_check_branch
        %456 = sbr.rel (%p454) target = $region86
      $region85: #{tpu_custom_call.1} parent=5 // pred_region
        %s457 = ssub.s32 %s15, 2
        // Predicated region
        $region87: #{tpu_custom_call.1} parent=85 // pred_check
          %p458 = pneg %p154
        $region88: #{tpu_custom_call.1} parent=85 // pred_check_branch
          %460 = sbr.rel (%p458) target = $region90
        $region89: #{tpu_custom_call.1} parent=85 // pred_region
          %s461 = sand.u32 %s139, 1
          %s462 = scalar_lea.sflag [#allocation5], %s461
          %s463 = sand.u32 %s139, 1
          %s464 = scalar_lea.vmem [#allocation4], %s463
          %465 = dma.done %s462, 16
        $region90: #{tpu_custom_call.1} parent=85 // pred_fallthru
          _
      $region86: #{tpu_custom_call.1} parent=5 // pred_fallthru
        _
    $region6: #{tpu_custom_call.1} parent=1 // loop_footer
      %s19 = sadd.s32 1, %s15
    $region7: #{tpu_custom_call.1} parent=1 // loop_footer_branch
      %14 = sbr.rel target = $region3
    $region8: #{tpu_custom_call.1} parent=1 // loop_exit
      _
    %466 = vsyncpa [#allocation5], 1
    %s467 = scalar_lea.sflag [#allocation5], 1
    %468 = vsyncpa %s467, 1

</llo_original>
